<compile_context>
chip_gen: v7x
topology: tpu7x:2x2x1
jax: 0.10.0
libtpu: 0.0.40
codegen_flags: <defaults>
</compile_context>

<pallas_src>
import math

import jax
import jax.numpy as jnp
from jax import lax
from jax.experimental import pallas as pl
from jax.experimental.pallas import tpu as pltpu


def _round_up(x, m):
    return ((x + m - 1) // m) * m


def _pick_tile(size, candidates):
    for c in candidates:
        if size % c == 0:
            return c
    return size  # unreachable: sizes are already multiples of 128


def _pad2d(a, rows, cols):
    r, c = a.shape
    if (r, c) == (rows, cols):
        return a  # skip the extra HBM pass when already aligned
    return jnp.pad(a, ((0, rows - r), (0, cols - c)))


def _lane_pad_multiple():
    """N-padding granularity: 256 on 256-wide-MXU chips (v6e/v7x), else 128."""
    try:
        kind = jax.devices()[0].device_kind.lower()
    except Exception:
        return 256
    if any(tag in kind for tag in ("v2", "v3", "v4", "v5")):
        return 128
    return 256


# ---------------------------------------------------------------------------
# Fused kernel (small-M path): softplus(W) + x @ Wp.T in one pass.
#   x_ref : (tm, tk)  (f32 or bf16)
#   w_ref : (tn, tk)  original f32 torch layout (out, in)
#   grid  : (N/tn, K/tk)  -- reduction (K) last; each weight tile read once.
# ---------------------------------------------------------------------------
def _fused_softplus_matmul_kernel(x_ref, w_ref, o_ref, acc_ref):
    k = pl.program_id(1)

    @pl.when(k == 0)
    def _init():
        acc_ref[...] = jnp.zeros_like(acc_ref)

    w = jax.nn.softplus(w_ref[...].astype(jnp.float32)).astype(jnp.bfloat16)
    x = x_ref[...].astype(jnp.bfloat16)
    acc_ref[...] += lax.dot_general(
        x, w,
        dimension_numbers=(((1,), (1,)), ((), ())),   # contract K with K
        preferred_element_type=jnp.float32)

    @pl.when(k == pl.num_programs(1) - 1)
    def _store():
        o_ref[...] = acc_ref[...].astype(o_ref.dtype)


# ---------------------------------------------------------------------------
# Kernel 1 (large-M path): softplus(W) in f32, written out TRANSPOSED as a
# (K, N) bf16 array so the matmul RHS is already MXU-friendly (no standalone
# XLA transpose pass over the weight).
# ---------------------------------------------------------------------------
def _softplus_transpose_kernel(w_ref, o_ref):
    w = jax.nn.softplus(w_ref[...].astype(jnp.float32))
    o_ref[...] = jnp.transpose(w).astype(o_ref.dtype)   # (bn,bk) -> (bk,bn)


def _softplus_bf16_transposed(w_pad):
    n_pad, k_pad = w_pad.shape
    bn = _pick_tile(n_pad, (512, 256, 128))
    bk = _pick_tile(k_pad, (1024, 512, 256, 128))
    return pl.pallas_call(
        _softplus_transpose_kernel,
        out_shape=jax.ShapeDtypeStruct((k_pad, n_pad), jnp.bfloat16),
        grid=(n_pad // bn, k_pad // bk),
        in_specs=[pl.BlockSpec((bn, bk), lambda i, j: (i, j))],
        out_specs=pl.BlockSpec((bk, bn), lambda i, j: (j, i)),
        compiler_params=pltpu.CompilerParams(
            dimension_semantics=("parallel", "parallel")),
    )(w_pad)


# ---------------------------------------------------------------------------
# Kernel 2 (large-M path): tiled bf16 matmul, f32 accumulator:  y = x @ wp,
# wp already in (K, N) layout.
# ---------------------------------------------------------------------------
def _matmul_kernel(x_ref, w_ref, o_ref, acc_ref):
    @pl.when(pl.program_id(2) == 0)
    def _init():
        acc_ref[...] = jnp.zeros_like(acc_ref)

    acc_ref[...] += jnp.dot(x_ref[...], w_ref[...],
                            preferred_element_type=jnp.float32)

    @pl.when(pl.program_id(2) == pl.num_programs(2) - 1)
    def _store():
        o_ref[...] = acc_ref[...].astype(o_ref.dtype)


def positive_linear(x: jax.Array, weight: jax.Array) -> jax.Array:
    """y = x @ softplus(weight).T   (torch.nn.functional.linear, bias=None)."""
    M, K = x.shape
    N, K2 = weight.shape
    assert K == K2, "input feature dim mismatch"
    out_dtype = x.dtype

    k_pad = _round_up(K, 128)
    n_pad = _round_up(N, _lane_pad_multiple())
    tn = _pick_tile(n_pad, (512, 256, 128))

    # -------------------------- small-M fused path --------------------------
    if M <= 512:
        tm = max(16, _round_up(M, 16))
        m_pad = tm
        tk = _pick_tile(k_pad, (512, 256, 128))

        x_p = _pad2d(x, m_pad, k_pad)
        if n_pad // tn > 1:
            # x is re-read N/tn times: pay the bf16 cast once in the wrapper.
            x_p = x_p.astype(jnp.bfloat16)
        w_p = _pad2d(weight, n_pad, k_pad)   # original f32 (N, K) layout

        grid = (n_pad // tn, k_pad // tk)
        cost = pl.CostEstimate(
            flops=2 * m_pad * n_pad * k_pad,
            transcendentals=n_pad * k_pad,
            bytes_accessed=(x_p.size * x_p.dtype.itemsize * (n_pad // tn)
                            + w_p.size * w_p.dtype.itemsize
                            + m_pad * n_pad * jnp.dtype(out_dtype).itemsize),
        )
        # TODO(synk): on v7x a (1, small) parallel grid uses only one of the
        # two TensorCores; nothing cheap to split for tiny batch/output sizes.
        y_pad = pl.pallas_call(
            _fused_softplus_matmul_kernel,
            out_shape=jax.ShapeDtypeStruct((m_pad, n_pad), out_dtype),
            grid_spec=pltpu.PrefetchScalarGridSpec(
                num_scalar_prefetch=0,
                grid=grid,
                in_specs=[
                    pl.BlockSpec((tm, tk), lambda j, k: (0, k)),
                    pl.BlockSpec((tn, tk), lambda j, k: (j, k)),
                ],
                out_specs=pl.BlockSpec((tm, tn), lambda j, k: (0, j)),
                scratch_shapes=[pltpu.VMEM((tm, tn), jnp.float32)],
            ),
            compiler_params=pltpu.CompilerParams(
                dimension_semantics=("parallel", "arbitrary")),
            cost_estimate=cost,
        )(x_p, w_p)
        return y_pad[:M, :N]

    # --------------------------- large-M path -------------------------------
    tm = 512 if (M % 512 == 0 or M >= 2048) else 256
    m_pad = _round_up(M, tm)
    tk = _pick_tile(k_pad, (1024, 512, 256, 128))

    x_p = _pad2d(x, m_pad, k_pad).astype(jnp.bfloat16)
    w_p = _pad2d(weight, n_pad, k_pad)

    # softplus once, already emitted in (K, N) bf16 layout.
    wp_t = _softplus_bf16_transposed(w_p)

    grid = (m_pad // tm, n_pad // tn, k_pad // tk)
    cost = pl.CostEstimate(
        flops=2 * m_pad * n_pad * k_pad,
        transcendentals=0,
        bytes_accessed=2 * (m_pad * k_pad * (n_pad // tn)
                            + k_pad * n_pad * (m_pad // tm))
        + m_pad * n_pad * jnp.dtype(out_dtype).itemsize,
    )
    y_pad = pl.pallas_call(
        _matmul_kernel,
        out_shape=jax.ShapeDtypeStruct((m_pad, n_pad), out_dtype),
        grid_spec=pltpu.PrefetchScalarGridSpec(
            num_scalar_prefetch=0,
            grid=grid,
            in_specs=[
                pl.BlockSpec((tm, tk), lambda i, j, k: (i, k)),
                pl.BlockSpec((tk, tn), lambda i, j, k: (k, j)),
            ],
            out_specs=pl.BlockSpec((tm, tn), lambda i, j, k: (i, j)),
            scratch_shapes=[pltpu.VMEM((tm, tn), jnp.float32)],
        ),
        compiler_params=pltpu.CompilerParams(
            dimension_semantics=("parallel", "parallel", "arbitrary")),
        cost_estimate=cost,
    )(x_p, wp_t)
    return y_pad[:M, :N]


def init_positive_linear_weight(key, input_size, output_size,
                                param_init_offset=-2.0, dtype=jnp.float32):
    """Deterministic re-implementation of PositiveLinear.reset_parameters().

    kaiming_uniform_(a=sqrt(5)) on a (out, in) tensor:
        gain  = sqrt(2 / (1 + a^2)) = sqrt(1/3)
        bound = gain * sqrt(3 / fan_in) = 1 / sqrt(fan_in)
    then add param_init_offset.
    """
    fan_in = input_size
    bound = 1.0 / math.sqrt(fan_in)
    w = jax.random.uniform(key, (output_size, input_size),
                           minval=-bound, maxval=bound, dtype=dtype)
    return w + jnp.asarray(param_init_offset, dtype=dtype)


if __name__ == "__main__":
    key = jax.random.PRNGKey(0)
    k_w, k_x, k_w2, k_x2 = jax.random.split(key, 4)

    def _bf16_ref(xa, wa):
        xb = xa.astype(jnp.bfloat16).astype(jnp.float32)
        wb = jax.nn.softplus(wa).astype(jnp.bfloat16).astype(jnp.float32)
        return xb @ wb.T

    # ---- small-batch (fused softplus+matmul kernel), module-sized shapes ----
    batch, input_size, output_size = 8, 32, 16
    weight = init_positive_linear_weight(k_w, input_size, output_size, -2.0)
    x = jax.random.normal(k_x, (batch, input_size), dtype=jnp.float32)

    y = positive_linear(x, weight)
    jax.block_until_ready(y)
    assert y.shape == (batch, output_size)
    y_ref_bf = _bf16_ref(x, weight)
    y_ref_f32 = x @ jax.nn.softplus(weight).T
    assert jnp.allclose(y, y_ref_bf, atol=2e-2, rtol=2e-2), "mismatch vs bf16 ref"
    assert jnp.allclose(y, y_ref_f32, atol=6e-2, rtol=6e-2), "mismatch vs f32 ref"

    # ---- unaligned shapes through the fused path (exercises padding) ----
    b2, in2, out2 = 200, 70, 130
    w2 = init_positive_linear_weight(k_w2, in2, out2, -2.0)
    x2 = jax.random.normal(k_x2, (b2, in2), dtype=jnp.float32)
    y2 = positive_linear(x2, w2)
    jax.block_until_ready(y2)
    assert y2.shape == (b2, out2)
    assert jnp.allclose(y2, _bf16_ref(x2, w2), atol=3e-2, rtol=3e-2), \
        "mismatch (unaligned fused path)"

    # ---- large-M path (transposed softplus kernel + wide-tile matmul) ----
    b3, in3, out3 = 640, 384, 256
    k_w3, k_x3 = jax.random.split(k_w2)
    w3 = init_positive_linear_weight(k_w3, in3, out3, -2.0)
    x3 = jax.random.normal(k_x3, (b3, in3), dtype=jnp.float32)
    y3 = positive_linear(x3, w3)
    jax.block_until_ready(y3)
    assert y3.shape == (b3, out3)
    assert jnp.allclose(y3, _bf16_ref(x3, w3), atol=8e-2, rtol=3e-2), \
        "mismatch (large-M path)"

    print("KERNEL_OK")
</pallas_src>

<mosaic_0001>
module attributes {stable_mosaic.version = 11 : i64} {
  func.func @_fused_softplus_matmul_kernel(%arg0: i32, %arg1: i32, %arg2: memref<16x128xf32, #tpu.memory_space<vmem>>, %arg3: memref<256x128xf32, #tpu.memory_space<vmem>>, %arg4: memref<16x256xf32, #tpu.memory_space<vmem>>, %arg5: memref<16x256xf32, #tpu.memory_space<vmem>>) attributes {dimension_semantics = [#tpu.dimension_semantics<parallel>, #tpu.dimension_semantics<arbitrary>], iteration_bounds = array<i64: 1, 1>, scalar_prefetch = 0 : i64, scratch_operands = 1 : i64, tpu.core_type = #tpu.core_type<tc>, window_params = [{transform_indices = @transform_0, window_bounds = array<i64: 16, 128>}, {transform_indices = @transform_1, window_bounds = array<i64: 256, 128>}, {transform_indices = @transform_2, window_bounds = array<i64: 16, 256>}]} {
    %c0_i32 = arith.constant 0 : i32
    %0 = arith.cmpi eq, %arg1, %c0_i32 : i32
    %1 = arith.extui %0 : i1 to i32
    %c0_i32_0 = arith.constant 0 : i32
    %2 = arith.cmpi ne, %1, %c0_i32_0 : i32
    scf.if %2 {
      %cst_12 = arith.constant 0.000000e+00 : f32
      %28 = vector.broadcast %cst_12 : f32 to vector<16x256xf32>
      %c0_13 = arith.constant 0 : index
      %c0_14 = arith.constant 0 : index
      %29 = vector.load %arg5[%c0_13, %c0_14] : memref<16x256xf32, #tpu.memory_space<vmem>>, vector<16x256xf32>
      tpu.vector_store %arg5[%c0_13, %c0_14], %28 {strides = array<i32>} : memref<16x256xf32, #tpu.memory_space<vmem>>, vector<16x256xf32>,
    } else {
    }
    %c0 = arith.constant 0 : index
    %c0_1 = arith.constant 0 : index
    %3 = vector.load %arg3[%c0, %c0_1] : memref<256x128xf32, #tpu.memory_space<vmem>>, vector<256x128xf32>
    %cst = arith.constant 0.000000e+00 : f32
    %4 = vector.broadcast %cst : f32 to vector<256x128xf32>
    %5 = arith.maximumf %3, %4 : vector<256x128xf32>
    %6 = vector.broadcast %cst : f32 to vector<256x128xf32>
    %7 = arith.subf %3, %6 : vector<256x128xf32>
    %8 = arith.cmpf one, %7, %7 : vector<256x128xf32>
    %9 = vector.broadcast %cst : f32 to vector<256x128xf32>
    %10 = arith.addf %3, %9 : vector<256x128xf32>
    %11 = math.absf %7 : vector<256x128xf32>
    %cst_2 = arith.constant 0.000000e+00 : f32
    %12 = vector.broadcast %cst_2 : f32 to vector<256x128xf32>
    %13 = arith.subf %12, %11 : vector<256x128xf32>
    %14 = math.exp %13 : vector<256x128xf32>
    %15 = math.log1p %14 : vector<256x128xf32>
    %16 = arith.addf %5, %15 : vector<256x128xf32>
    %17 = arith.select %8, %10, %16 : vector<256x128xi1>, vector<256x128xf32>
    %18 = arith.truncf %17 : vector<256x128xf32> to vector<256x128xbf16>
    %c0_3 = arith.constant 0 : index
    %c0_4 = arith.constant 0 : index
    %19 = vector.load %arg2[%c0_3, %c0_4] : memref<16x128xf32, #tpu.memory_space<vmem>>, vector<16x128xf32>
    %20 = arith.truncf %19 : vector<16x128xf32> to vector<16x128xbf16>
    %c0_5 = arith.constant 0 : index
    %c0_6 = arith.constant 0 : index
    %21 = vector.load %arg5[%c0_5, %c0_6] : memref<16x256xf32, #tpu.memory_space<vmem>>, vector<16x256xf32>
    %cst_7 = arith.constant dense<0.000000e+00> : vector<16x256xf32>
    %22 = tpu.matmul %20, %18, %cst_7 {dimension_numbers = #tpu.dot_dimension_numbers<[1], [1], [0], [0], [0, 0, 1, 0], [], []>} : vector<16x128xbf16>, vector<256x128xbf16>, vector<16x256xf32> -> vector<16x256xf32>
    %23 = arith.addf %21, %22 : vector<16x256xf32>
    %c0_8 = arith.constant 0 : index
    %c0_9 = arith.constant 0 : index
    %24 = vector.load %arg5[%c0_8, %c0_9] : memref<16x256xf32, #tpu.memory_space<vmem>>, vector<16x256xf32>
    tpu.vector_store %arg5[%c0_8, %c0_9], %23 {strides = array<i32>} : memref<16x256xf32, #tpu.memory_space<vmem>>, vector<16x256xf32>,
    %c0_i32_10 = arith.constant 0 : i32
    %25 = arith.cmpi eq, %arg1, %c0_i32_10 : i32
    %26 = arith.extui %25 : i1 to i32
    %c0_i32_11 = arith.constant 0 : i32
    %27 = arith.cmpi ne, %26, %c0_i32_11 : i32
    scf.if %27 {
      %c0_12 = arith.constant 0 : index
      %c0_13 = arith.constant 0 : index
      %28 = vector.load %arg5[%c0_12, %c0_13] : memref<16x256xf32, #tpu.memory_space<vmem>>, vector<16x256xf32>
      %c0_14 = arith.constant 0 : index
      %c0_15 = arith.constant 0 : index
      %29 = vector.load %arg4[%c0_14, %c0_15] : memref<16x256xf32, #tpu.memory_space<vmem>>, vector<16x256xf32>
      tpu.vector_store %arg4[%c0_14, %c0_15], %28 {strides = array<i32>} : memref<16x256xf32, #tpu.memory_space<vmem>>, vector<16x256xf32>,
    } else {
    }
    return
  }
  func.func @transform_0(%arg0: i32, %arg1: i32) -> (i32, i32) {
    %c0_i32 = arith.constant 0 : i32
    %c0_i32_0 = arith.constant 0 : i32
    return %c0_i32, %arg1 : i32, i32
  }
  func.func @transform_1(%arg0: i32, %arg1: i32) -> (i32, i32) {
    %c0_i32 = arith.constant 0 : i32
    return %arg0, %arg1 : i32, i32
  }
  func.func @transform_2(%arg0: i32, %arg1: i32) -> (i32, i32) {
    %c0_i32 = arith.constant 0 : i32
    %c0_i32_0 = arith.constant 0 : i32
    return %c0_i32, %arg0 : i32, i32
  }
}

</mosaic_0001>

<llo_original>
// kernel: tpu_custom_call.1
$region0: #{tpu_custom_call.1}
  #allocation0 [shape = 'u32[]', space=smem, size = 0x4, offset = 0x4, fixed_abs, tag = 'smem constant byte address 0x4 - core index']
  #allocation1 [shape = 'u32[144,128]{1,0:T(1,128)}', space=vmem, size = 0x12000, scoped, tag = 'internal scratch']
  #allocation2 [shape = 'f32[16,256]{1,0:T(8,128)}', space=vmem, size = 0x4000, scoped, tag = 'scratch operand']
  %s0 = inlined_call_operand.hbm [shape: f32[16,128], index: 0, kind: input, shape index: {}]
  %s1 = inlined_call_operand.hbm [shape: f32[256,128], index: 1, kind: input, shape index: {}]
  %s2 = inlined_call_operand.hbm [shape: f32[16,256], index: 2, kind: output, shape index: {}]
  %s3 = sld [smem:[#allocation0]]
  $region34: #{tpu_custom_call.1} parent=0
    _
  %s5 = ssub.s32 1, %s3
  %s6 = scalar_select 0, %s5, %s3
  $region1: #{tpu_custom_call.1} parent=0
    #allocation3 [shape = 'u8[8192]{0}', space=vmem, size = 0x2000, scoped, tag = 'input window, operand 0, single buffered']
    #allocation4 [shape = 's32[1]{0}', space=sflag, size = 0x4, scoped, tag = 'scoped memory for tpu_custom_call.1']
    #allocation5 [shape = 's32[1]{0}', space=sflag, size = 0x4, scoped, tag = 'scoped memory for tpu_custom_call.1']
    #allocation6 [shape = 'u8[131072]{0}', space=vmem, size = 0x20000, scoped, tag = 'input window, operand 1, single buffered']
    #allocation7 [shape = 's32[1]{0}', space=sflag, size = 0x4, scoped, tag = 'scoped memory for tpu_custom_call.1']
    #allocation8 [shape = 'u8[16384]{0}', space=vmem, size = 0x4000, scoped, tag = 'output window, operand 0, single buffered']
    %7 = vsyncpa [#allocation4], 0
    %8 = vsyncpa [#allocation7], 0
    %9 = vsyncpa [#allocation5], 0
    // Predicated region
    $region2: #{tpu_custom_call.1} parent=1 // pred_check
      _
    $region3: #{tpu_custom_call.1} parent=1 // pred_check_branch
      %11 = sbr.rel (0) target = $region5
    $region4: #{tpu_custom_call.1} parent=1 // pred_region
      %s13 = ssub.s32 256, 256
      %14 = vsyncadd [#allocation4], %s13
      %s15 = sshll.u32 [#allocation3], 4
      %s16 = int_to_ptr.vmem [resolvable:$true] %s15
      %21 = dma.hbm_to_vmem [thread:$0]  %s0, 256, %s16, [#allocation4], 128, 128, 8
    $region5: #{tpu_custom_call.1} parent=1 // pred_fallthru
      _
    // Predicated region
    $region6: #{tpu_custom_call.1} parent=1 // pred_check
      _
    $region7: #{tpu_custom_call.1} parent=1 // pred_check_branch
      %23 = sbr.rel (0) target = $region9
    $region8: #{tpu_custom_call.1} parent=1 // pred_region
      %s25 = ssub.s32 4096, 4096
      %26 = vsyncadd [#allocation7], %s25
      %s27 = sshll.u32 [#allocation6], 4
      %s28 = int_to_ptr.vmem [resolvable:$true] %s27
      %33 = dma.hbm_to_vmem [thread:$0]  %s1, 4096, %s28, [#allocation7], 128, 128, 8
    $region9: #{tpu_custom_call.1} parent=1 // pred_fallthru
      _
    // Predicated region
    $region10: #{tpu_custom_call.1} parent=1 // pred_check
      _
    $region11: #{tpu_custom_call.1} parent=1 // pred_check_branch
      %35 = sbr.rel (0) target = $region13
    $region12: #{tpu_custom_call.1} parent=1 // pred_region
      %36 = dma.done [#allocation4], 256
    $region13: #{tpu_custom_call.1} parent=1 // pred_fallthru
      _
    // Predicated region
    $region14: #{tpu_custom_call.1} parent=1 // pred_check
      _
    $region15: #{tpu_custom_call.1} parent=1 // pred_check_branch
      %38 = sbr.rel (0) target = $region17
    $region16: #{tpu_custom_call.1} parent=1 // pred_region
      %39 = dma.done [#allocation7], 4096
    $region17: #{tpu_custom_call.1} parent=1 // pred_fallthru
      _
    %p41 = scmp.eq.s32.totalorder 0, 0
    // Predicated region
    $region18: #{tpu_custom_call.1} parent=1 // pred_check
      %p42 = pneg %p41
    $region19: #{tpu_custom_call.1} parent=1 // pred_check_branch
      %44 = sbr.rel (%p42) target = $region21
    $region20: #{tpu_custom_call.1} parent=1 // pred_region
      %45 = vst [vmem:[#allocation2] sm:$0xff] 0.0
      %46 = vst [vmem:[#allocation2 + $0x8] sm:$0xff] 0.0
      %47 = vst [vmem:[#allocation2 + $0x10] sm:$0xff] 0.0
      %48 = vst [vmem:[#allocation2 + $0x18] sm:$0xff] 0.0
    $region21: #{tpu_custom_call.1} parent=1 // pred_fallthru
      _
    %v49 = vld [vmem:[#allocation6] sm:$0xff]
    %v50 = vld [vmem:[#allocation6 + $0x8] sm:$0xff]
    %v51 = vld [vmem:[#allocation6 + $0x10] sm:$0xff]
    %v52 = vld [vmem:[#allocation6 + $0x18] sm:$0xff]
    %v53 = vld [vmem:[#allocation6 + $0x20] sm:$0xff]
    %v54 = vld [vmem:[#allocation6 + $0x28] sm:$0xff]
    %v55 = vld [vmem:[#allocation6 + $0x30] sm:$0xff]
    %v56 = vld [vmem:[#allocation6 + $0x38] sm:$0xff]
    %v57 = vld [vmem:[#allocation6 + $0x40] sm:$0xff]
    %v58 = vld [vmem:[#allocation6 + $0x48] sm:$0xff]
    %v59 = vld [vmem:[#allocation6 + $0x50] sm:$0xff]
    %v60 = vld [vmem:[#allocation6 + $0x58] sm:$0xff]
    %v61 = vld [vmem:[#allocation6 + $0x60] sm:$0xff]
    %v62 = vld [vmem:[#allocation6 + $0x68] sm:$0xff]
    %v63 = vld [vmem:[#allocation6 + $0x70] sm:$0xff]
    %v64 = vld [vmem:[#allocation6 + $0x78] sm:$0xff]
    %v65 = vld [vmem:[#allocation6 + $0x80] sm:$0xff]
    %v66 = vld [vmem:[#allocation6 + $0x88] sm:$0xff]
    %v67 = vld [vmem:[#allocation6 + $0x90] sm:$0xff]
    %v68 = vld [vmem:[#allocation6 + $0x98] sm:$0xff]
    %v69 = vld [vmem:[#allocation6 + $0xa0] sm:$0xff]
    %v70 = vld [vmem:[#allocation6 + $0xa8] sm:$0xff]
    %v71 = vld [vmem:[#allocation6 + $0xb0] sm:$0xff]
    %v72 = vld [vmem:[#allocation6 + $0xb8] sm:$0xff]
    %v73 = vld [vmem:[#allocation6 + $0xc0] sm:$0xff]
    %v74 = vld [vmem:[#allocation6 + $0xc8] sm:$0xff]
    %v75 = vld [vmem:[#allocation6 + $0xd0] sm:$0xff]
    %v76 = vld [vmem:[#allocation6 + $0xd8] sm:$0xff]
    %v77 = vld [vmem:[#allocation6 + $0xe0] sm:$0xff]
    %v78 = vld [vmem:[#allocation6 + $0xe8] sm:$0xff]
    %v79 = vld [vmem:[#allocation6 + $0xf0] sm:$0xff]
    %v80 = vld [vmem:[#allocation6 + $0xf8] sm:$0xff]
    %v81 = vmax.f32 %v49, 0.0
    %v82 = vmax.f32 %v50, 0.0
    %v83 = vmax.f32 %v51, 0.0
    %v84 = vmax.f32 %v52, 0.0
    %v85 = vmax.f32 %v53, 0.0
    %v86 = vmax.f32 %v54, 0.0
    %v87 = vmax.f32 %v55, 0.0
    %v88 = vmax.f32 %v56, 0.0
    %v89 = vmax.f32 %v57, 0.0
    %v90 = vmax.f32 %v58, 0.0
    %v91 = vmax.f32 %v59, 0.0
    %v92 = vmax.f32 %v60, 0.0
    %v93 = vmax.f32 %v61, 0.0
    %v94 = vmax.f32 %v62, 0.0
    %v95 = vmax.f32 %v63, 0.0
    %v96 = vmax.f32 %v64, 0.0
    %v97 = vmax.f32 %v65, 0.0
    %v98 = vmax.f32 %v66, 0.0
    %v99 = vmax.f32 %v67, 0.0
    %v100 = vmax.f32 %v68, 0.0
    %v101 = vmax.f32 %v69, 0.0
    %v102 = vmax.f32 %v70, 0.0
    %v103 = vmax.f32 %v71, 0.0
    %v104 = vmax.f32 %v72, 0.0
    %v105 = vmax.f32 %v73, 0.0
    %v106 = vmax.f32 %v74, 0.0
    %v107 = vmax.f32 %v75, 0.0
    %v108 = vmax.f32 %v76, 0.0
    %v109 = vmax.f32 %v77, 0.0
    %v110 = vmax.f32 %v78, 0.0
    %v111 = vmax.f32 %v79, 0.0
    %v112 = vmax.f32 %v80, 0.0
    %vm113 = vcmp.ne.f32.partialorder %v49, %v49
    %vm114 = vcmp.ne.f32.partialorder %v50, %v50
    %vm115 = vcmp.ne.f32.partialorder %v51, %v51
    %vm116 = vcmp.ne.f32.partialorder %v52, %v52
    %vm117 = vcmp.ne.f32.partialorder %v53, %v53
    %vm118 = vcmp.ne.f32.partialorder %v54, %v54
    %vm119 = vcmp.ne.f32.partialorder %v55, %v55
    %vm120 = vcmp.ne.f32.partialorder %v56, %v56
    %vm121 = vcmp.ne.f32.partialorder %v57, %v57
    %vm122 = vcmp.ne.f32.partialorder %v58, %v58
    %vm123 = vcmp.ne.f32.partialorder %v59, %v59
    %vm124 = vcmp.ne.f32.partialorder %v60, %v60
    %vm125 = vcmp.ne.f32.partialorder %v61, %v61
    %vm126 = vcmp.ne.f32.partialorder %v62, %v62
    %vm127 = vcmp.ne.f32.partialorder %v63, %v63
    %vm128 = vcmp.ne.f32.partialorder %v64, %v64
    %vm129 = vcmp.ne.f32.partialorder %v65, %v65
    %vm130 = vcmp.ne.f32.partialorder %v66, %v66
    %vm131 = vcmp.ne.f32.partialorder %v67, %v67
    %vm132 = vcmp.ne.f32.partialorder %v68, %v68
    %vm133 = vcmp.ne.f32.partialorder %v69, %v69
    %vm134 = vcmp.ne.f32.partialorder %v70, %v70
    %vm135 = vcmp.ne.f32.partialorder %v71, %v71
    %vm136 = vcmp.ne.f32.partialorder %v72, %v72
    %vm137 = vcmp.ne.f32.partialorder %v73, %v73
    %vm138 = vcmp.ne.f32.partialorder %v74, %v74
    %vm139 = vcmp.ne.f32.partialorder %v75, %v75
    %vm140 = vcmp.ne.f32.partialorder %v76, %v76
    %vm141 = vcmp.ne.f32.partialorder %v77, %v77
    %vm142 = vcmp.ne.f32.partialorder %v78, %v78
    %vm143 = vcmp.ne.f32.partialorder %v79, %v79
    %vm144 = vcmp.ne.f32.partialorder %v80, %v80
    %v145 = vadd.f32 %v49, 0.0
    %v146 = vadd.f32 %v50, 0.0
    %v147 = vadd.f32 %v51, 0.0
    %v148 = vadd.f32 %v52, 0.0
    %v149 = vadd.f32 %v53, 0.0
    %v150 = vadd.f32 %v54, 0.0
    %v151 = vadd.f32 %v55, 0.0
    %v152 = vadd.f32 %v56, 0.0
    %v153 = vadd.f32 %v57, 0.0
    %v154 = vadd.f32 %v58, 0.0
    %v155 = vadd.f32 %v59, 0.0
    %v156 = vadd.f32 %v60, 0.0
    %v157 = vadd.f32 %v61, 0.0
    %v158 = vadd.f32 %v62, 0.0
    %v159 = vadd.f32 %v63, 0.0
    %v160 = vadd.f32 %v64, 0.0
    %v161 = vadd.f32 %v65, 0.0
    %v162 = vadd.f32 %v66, 0.0
    %v163 = vadd.f32 %v67, 0.0
    %v164 = vadd.f32 %v68, 0.0
    %v165 = vadd.f32 %v69, 0.0
    %v166 = vadd.f32 %v70, 0.0
    %v167 = vadd.f32 %v71, 0.0
    %v168 = vadd.f32 %v72, 0.0
    %v169 = vadd.f32 %v73, 0.0
    %v170 = vadd.f32 %v74, 0.0
    %v171 = vadd.f32 %v75, 0.0
    %v172 = vadd.f32 %v76, 0.0
    %v173 = vadd.f32 %v77, 0.0
    %v174 = vadd.f32 %v78, 0.0
    %v175 = vadd.f32 %v79, 0.0
    %v176 = vadd.f32 %v80, 0.0
    %v177 = vand.u32 2147483647, %v49
    %v178 = vand.u32 2147483647, %v50
    %v179 = vand.u32 2147483647, %v51
    %v180 = vand.u32 2147483647, %v52
    %v181 = vand.u32 2147483647, %v53
    %v182 = vand.u32 2147483647, %v54
    %v183 = vand.u32 2147483647, %v55
    %v184 = vand.u32 2147483647, %v56
    %v185 = vand.u32 2147483647, %v57
    %v186 = vand.u32 2147483647, %v58
    %v187 = vand.u32 2147483647, %v59
    %v188 = vand.u32 2147483647, %v60
    %v189 = vand.u32 2147483647, %v61
    %v190 = vand.u32 2147483647, %v62
    %v191 = vand.u32 2147483647, %v63
    %v192 = vand.u32 2147483647, %v64
    %v193 = vand.u32 2147483647, %v65
    %v194 = vand.u32 2147483647, %v66
    %v195 = vand.u32 2147483647, %v67
    %v196 = vand.u32 2147483647, %v68
    %v197 = vand.u32 2147483647, %v69
    %v198 = vand.u32 2147483647, %v70
    %v199 = vand.u32 2147483647, %v71
    %v200 = vand.u32 2147483647, %v72
    %v201 = vand.u32 2147483647, %v73
    %v202 = vand.u32 2147483647, %v74
    %v203 = vand.u32 2147483647, %v75
    %v204 = vand.u32 2147483647, %v76
    %v205 = vand.u32 2147483647, %v77
    %v206 = vand.u32 2147483647, %v78
    %v207 = vand.u32 2147483647, %v79
    %v208 = vand.u32 2147483647, %v80
    %v209 = vsub.f32 0.0, %v177
    %v210 = vsub.f32 0.0, %v178
    %v211 = vsub.f32 0.0, %v179
    %v212 = vsub.f32 0.0, %v180
    %v213 = vsub.f32 0.0, %v181
    %v214 = vsub.f32 0.0, %v182
    %v215 = vsub.f32 0.0, %v183
    %v216 = vsub.f32 0.0, %v184
    %v217 = vsub.f32 0.0, %v185
    %v218 = vsub.f32 0.0, %v186
    %v219 = vsub.f32 0.0, %v187
    %v220 = vsub.f32 0.0, %v188
    %v221 = vsub.f32 0.0, %v189
    %v222 = vsub.f32 0.0, %v190
    %v223 = vsub.f32 0.0, %v191
    %v224 = vsub.f32 0.0, %v192
    %v225 = vsub.f32 0.0, %v193
    %v226 = vsub.f32 0.0, %v194
    %v227 = vsub.f32 0.0, %v195
    %v228 = vsub.f32 0.0, %v196
    %v229 = vsub.f32 0.0, %v197
    %v230 = vsub.f32 0.0, %v198
    %v231 = vsub.f32 0.0, %v199
    %v232 = vsub.f32 0.0, %v200
    %v233 = vsub.f32 0.0, %v201
    %v234 = vsub.f32 0.0, %v202
    %v235 = vsub.f32 0.0, %v203
    %v236 = vsub.f32 0.0, %v204
    %v237 = vsub.f32 0.0, %v205
    %v238 = vsub.f32 0.0, %v206
    %v239 = vsub.f32 0.0, %v207
    %v240 = vsub.f32 0.0, %v208
    %v241 = vmul.f32 %v209, 1.442695
    %v242 = vpow.pop %v241
    %v243 = vmul.f32 %v210, 1.442695
    %v244 = vpow.pop %v243
    %v245 = vmul.f32 %v211, 1.442695
    %v246 = vpow.pop %v245
    %v247 = vmul.f32 %v212, 1.442695
    %v248 = vpow.pop %v247
    %v249 = vmul.f32 %v213, 1.442695
    %v250 = vpow.pop %v249
    %v251 = vmul.f32 %v214, 1.442695
    %v252 = vpow.pop %v251
    %v253 = vmul.f32 %v215, 1.442695
    %v254 = vpow.pop %v253
    %v255 = vmul.f32 %v216, 1.442695
    %v256 = vpow.pop %v255
    %v257 = vmul.f32 %v217, 1.442695
    %v258 = vpow.pop %v257
    %v259 = vmul.f32 %v218, 1.442695
    %v260 = vpow.pop %v259
    %v261 = vmul.f32 %v219, 1.442695
    %v262 = vpow.pop %v261
    %v263 = vmul.f32 %v220, 1.442695
    %v264 = vpow.pop %v263
    %v265 = vmul.f32 %v221, 1.442695
    %v266 = vpow.pop %v265
    %v267 = vmul.f32 %v222, 1.442695
    %v268 = vpow.pop %v267
    %v269 = vmul.f32 %v223, 1.442695
    %v270 = vpow.pop %v269
    %v271 = vmul.f32 %v224, 1.442695
    %v272 = vpow.pop %v271
    %v273 = vmul.f32 %v225, 1.442695
    %v274 = vpow.pop %v273
    %v275 = vmul.f32 %v226, 1.442695
    %v276 = vpow.pop %v275
    %v277 = vmul.f32 %v227, 1.442695
    %v278 = vpow.pop %v277
    %v279 = vmul.f32 %v228, 1.442695
    %v280 = vpow.pop %v279
    %v281 = vmul.f32 %v229, 1.442695
    %v282 = vpow.pop %v281
    %v283 = vmul.f32 %v230, 1.442695
    %v284 = vpow.pop %v283
    %v285 = vmul.f32 %v231, 1.442695
    %v286 = vpow.pop %v285
    %v287 = vmul.f32 %v232, 1.442695
    %v288 = vpow.pop %v287
    %v289 = vmul.f32 %v233, 1.442695
    %v290 = vpow.pop %v289
    %v291 = vmul.f32 %v234, 1.442695
    %v292 = vpow.pop %v291
    %v293 = vmul.f32 %v235, 1.442695
    %v294 = vpow.pop %v293
    %v295 = vmul.f32 %v236, 1.442695
    %v296 = vpow.pop %v295
    %v297 = vmul.f32 %v237, 1.442695
    %v298 = vpow.pop %v297
    %v299 = vmul.f32 %v238, 1.442695
    %v300 = vpow.pop %v299
    %v301 = vmul.f32 %v239, 1.442695
    %v302 = vpow.pop %v301
    %v303 = vmul.f32 %v240, 1.442695
    %v304 = vpow.pop %v303
    %v305 = vadd.f32 %v242, 1.0
    %v306 = vlog2.pop %v305
    %v307 = vmul.f32 %v306, 0.6931472
    %v308 = vmul.f32 -0.5, %v242
    %v309 = vadd.f32 %v308, 1.0
    %v310 = vmul.f32 %v309, %v242
    %v311 = vand.u32 2147483647, %v242
    %vm312 = vcmp.lt.f32.partialorder %v311, 0.0004427343
    %v313 = vsel %vm312, %v310, %v307
    %v314 = vadd.f32 %v244, 1.0
    %v315 = vlog2.pop %v314
    %v316 = vmul.f32 %v315, 0.6931472
    %v317 = vmul.f32 -0.5, %v244
    %v318 = vadd.f32 %v317, 1.0
    %v319 = vmul.f32 %v318, %v244
    %v320 = vand.u32 2147483647, %v244
    %vm321 = vcmp.lt.f32.partialorder %v320, 0.0004427343
    %v322 = vsel %vm321, %v319, %v316
    %v323 = vadd.f32 %v246, 1.0
    %v324 = vlog2.pop %v323
    %v325 = vmul.f32 %v324, 0.6931472
    %v326 = vmul.f32 -0.5, %v246
    %v327 = vadd.f32 %v326, 1.0
    %v328 = vmul.f32 %v327, %v246
    %v329 = vand.u32 2147483647, %v246
    %vm330 = vcmp.lt.f32.partialorder %v329, 0.0004427343
    %v331 = vsel %vm330, %v328, %v325
    %v332 = vadd.f32 %v248, 1.0
    %v333 = vlog2.pop %v332
    %v334 = vmul.f32 %v333, 0.6931472
    %v335 = vmul.f32 -0.5, %v248
    %v336 = vadd.f32 %v335, 1.0
    %v337 = vmul.f32 %v336, %v248
    %v338 = vand.u32 2147483647, %v248
    %vm339 = vcmp.lt.f32.partialorder %v338, 0.0004427343
    %v340 = vsel %vm339, %v337, %v334
    %v341 = vadd.f32 %v250, 1.0
    %v342 = vlog2.pop %v341
    %v343 = vmul.f32 %v342, 0.6931472
    %v344 = vmul.f32 -0.5, %v250
    %v345 = vadd.f32 %v344, 1.0
    %v346 = vmul.f32 %v345, %v250
    %v347 = vand.u32 2147483647, %v250
    %vm348 = vcmp.lt.f32.partialorder %v347, 0.0004427343
    %v349 = vsel %vm348, %v346, %v343
    %v350 = vadd.f32 %v252, 1.0
    %v351 = vlog2.pop %v350
    %v352 = vmul.f32 %v351, 0.6931472
    %v353 = vmul.f32 -0.5, %v252
    %v354 = vadd.f32 %v353, 1.0
    %v355 = vmul.f32 %v354, %v252
    %v356 = vand.u32 2147483647, %v252
    %vm357 = vcmp.lt.f32.partialorder %v356, 0.0004427343
    %v358 = vsel %vm357, %v355, %v352
    %v359 = vadd.f32 %v254, 1.0
    %v360 = vlog2.pop %v359
    %v361 = vmul.f32 %v360, 0.6931472
    %v362 = vmul.f32 -0.5, %v254
    %v363 = vadd.f32 %v362, 1.0
    %v364 = vmul.f32 %v363, %v254
    %v365 = vand.u32 2147483647, %v254
    %vm366 = vcmp.lt.f32.partialorder %v365, 0.0004427343
    %v367 = vsel %vm366, %v364, %v361
    %v368 = vadd.f32 %v256, 1.0
    %v369 = vlog2.pop %v368
    %v370 = vmul.f32 %v369, 0.6931472
    %v371 = vmul.f32 -0.5, %v256
    %v372 = vadd.f32 %v371, 1.0
    %v373 = vmul.f32 %v372, %v256
    %v374 = vand.u32 2147483647, %v256
    %vm375 = vcmp.lt.f32.partialorder %v374, 0.0004427343
    %v376 = vsel %vm375, %v373, %v370
    %v377 = vadd.f32 %v258, 1.0
    %v378 = vlog2.pop %v377
    %v379 = vmul.f32 %v378, 0.6931472
    %v380 = vmul.f32 -0.5, %v258
    %v381 = vadd.f32 %v380, 1.0
    %v382 = vmul.f32 %v381, %v258
    %v383 = vand.u32 2147483647, %v258
    %vm384 = vcmp.lt.f32.partialorder %v383, 0.0004427343
    %v385 = vsel %vm384, %v382, %v379
    %v386 = vadd.f32 %v260, 1.0
    %v387 = vlog2.pop %v386
    %v388 = vmul.f32 %v387, 0.6931472
    %v389 = vmul.f32 -0.5, %v260
    %v390 = vadd.f32 %v389, 1.0
    %v391 = vmul.f32 %v390, %v260
    %v392 = vand.u32 2147483647, %v260
    %vm393 = vcmp.lt.f32.partialorder %v392, 0.0004427343
    %v394 = vsel %vm393, %v391, %v388
    %v395 = vadd.f32 %v262, 1.0
    %v396 = vlog2.pop %v395
    %v397 = vmul.f32 %v396, 0.6931472
    %v398 = vmul.f32 -0.5, %v262
    %v399 = vadd.f32 %v398, 1.0
    %v400 = vmul.f32 %v399, %v262
    %v401 = vand.u32 2147483647, %v262
    %vm402 = vcmp.lt.f32.partialorder %v401, 0.0004427343
    %v403 = vsel %vm402, %v400, %v397
    %v404 = vadd.f32 %v264, 1.0
    %v405 = vlog2.pop %v404
    %v406 = vmul.f32 %v405, 0.6931472
    %v407 = vmul.f32 -0.5, %v264
    %v408 = vadd.f32 %v407, 1.0
    %v409 = vmul.f32 %v408, %v264
    %v410 = vand.u32 2147483647, %v264
    %vm411 = vcmp.lt.f32.partialorder %v410, 0.0004427343
    %v412 = vsel %vm411, %v409, %v406
    %v413 = vadd.f32 %v266, 1.0
    %v414 = vlog2.pop %v413
    %v415 = vmul.f32 %v414, 0.6931472
    %v416 = vmul.f32 -0.5, %v266
    %v417 = vadd.f32 %v416, 1.0
    %v418 = vmul.f32 %v417, %v266
    %v419 = vand.u32 2147483647, %v266
    %vm420 = vcmp.lt.f32.partialorder %v419, 0.0004427343
    %v421 = vsel %vm420, %v418, %v415
    %v422 = vadd.f32 %v268, 1.0
    %v423 = vlog2.pop %v422
    %v424 = vmul.f32 %v423, 0.6931472
    %v425 = vmul.f32 -0.5, %v268
    %v426 = vadd.f32 %v425, 1.0
    %v427 = vmul.f32 %v426, %v268
    %v428 = vand.u32 2147483647, %v268
    %vm429 = vcmp.lt.f32.partialorder %v428, 0.0004427343
    %v430 = vsel %vm429, %v427, %v424
    %v431 = vadd.f32 %v270, 1.0
    %v432 = vlog2.pop %v431
    %v433 = vmul.f32 %v432, 0.6931472
    %v434 = vmul.f32 -0.5, %v270
    %v435 = vadd.f32 %v434, 1.0
    %v436 = vmul.f32 %v435, %v270
    %v437 = vand.u32 2147483647, %v270
    %vm438 = vcmp.lt.f32.partialorder %v437, 0.0004427343
    %v439 = vsel %vm438, %v436, %v433
    %v440 = vadd.f32 %v272, 1.0
    %v441 = vlog2.pop %v440
    %v442 = vmul.f32 %v441, 0.6931472
    %v443 = vmul.f32 -0.5, %v272
    %v444 = vadd.f32 %v443, 1.0
    %v445 = vmul.f32 %v444, %v272
    %v446 = vand.u32 2147483647, %v272
    %vm447 = vcmp.lt.f32.partialorder %v446, 0.0004427343
    %v448 = vsel %vm447, %v445, %v442
    %v449 = vadd.f32 %v274, 1.0
    %v450 = vlog2.pop %v449
    %v451 = vmul.f32 %v450, 0.6931472
    %v452 = vmul.f32 -0.5, %v274
    %v453 = vadd.f32 %v452, 1.0
    %v454 = vmul.f32 %v453, %v274
    %v455 = vand.u32 2147483647, %v274
    %vm456 = vcmp.lt.f32.partialorder %v455, 0.0004427343
    %v457 = vsel %vm456, %v454, %v451
    %v458 = vadd.f32 %v276, 1.0
    %v459 = vlog2.pop %v458
    %v460 = vmul.f32 %v459, 0.6931472
    %v461 = vmul.f32 -0.5, %v276
    %v462 = vadd.f32 %v461, 1.0
    %v463 = vmul.f32 %v462, %v276
    %v464 = vand.u32 2147483647, %v276
    %vm465 = vcmp.lt.f32.partialorder %v464, 0.0004427343
    %v466 = vsel %vm465, %v463, %v460
    %v467 = vadd.f32 %v278, 1.0
    %v468 = vlog2.pop %v467
    %v469 = vmul.f32 %v468, 0.6931472
    %v470 = vmul.f32 -0.5, %v278
    %v471 = vadd.f32 %v470, 1.0
    %v472 = vmul.f32 %v471, %v278
    %v473 = vand.u32 2147483647, %v278
    %vm474 = vcmp.lt.f32.partialorder %v473, 0.0004427343
    %v475 = vsel %vm474, %v472, %v469
    %v476 = vadd.f32 %v280, 1.0
    %v477 = vlog2.pop %v476
    %v478 = vmul.f32 %v477, 0.6931472
    %v479 = vmul.f32 -0.5, %v280
    %v480 = vadd.f32 %v479, 1.0
    %v481 = vmul.f32 %v480, %v280
    %v482 = vand.u32 2147483647, %v280
    %vm483 = vcmp.lt.f32.partialorder %v482, 0.0004427343
    %v484 = vsel %vm483, %v481, %v478
    %v485 = vadd.f32 %v282, 1.0
    %v486 = vlog2.pop %v485
    %v487 = vmul.f32 %v486, 0.6931472
    %v488 = vmul.f32 -0.5, %v282
    %v489 = vadd.f32 %v488, 1.0
    %v490 = vmul.f32 %v489, %v282
    %v491 = vand.u32 2147483647, %v282
    %vm492 = vcmp.lt.f32.partialorder %v491, 0.0004427343
    %v493 = vsel %vm492, %v490, %v487
    %v494 = vadd.f32 %v284, 1.0
    %v495 = vlog2.pop %v494
    %v496 = vmul.f32 %v495, 0.6931472
    %v497 = vmul.f32 -0.5, %v284
    %v498 = vadd.f32 %v497, 1.0
    %v499 = vmul.f32 %v498, %v284
    %v500 = vand.u32 2147483647, %v284
    %vm501 = vcmp.lt.f32.partialorder %v500, 0.0004427343
    %v502 = vsel %vm501, %v499, %v496
    %v503 = vadd.f32 %v286, 1.0
    %v504 = vlog2.pop %v503
    %v505 = vmul.f32 %v504, 0.6931472
    %v506 = vmul.f32 -0.5, %v286
    %v507 = vadd.f32 %v506, 1.0
    %v508 = vmul.f32 %v507, %v286
    %v509 = vand.u32 2147483647, %v286
    %vm510 = vcmp.lt.f32.partialorder %v509, 0.0004427343
    %v511 = vsel %vm510, %v508, %v505
    %v512 = vadd.f32 %v288, 1.0
    %v513 = vlog2.pop %v512
    %v514 = vmul.f32 %v513, 0.6931472
    %v515 = vmul.f32 -0.5, %v288
    %v516 = vadd.f32 %v515, 1.0
    %v517 = vmul.f32 %v516, %v288
    %v518 = vand.u32 2147483647, %v288
    %vm519 = vcmp.lt.f32.partialorder %v518, 0.0004427343
    %v520 = vsel %vm519, %v517, %v514
    %v521 = vadd.f32 %v290, 1.0
    %v522 = vlog2.pop %v521
    %v523 = vmul.f32 %v522, 0.6931472
    %v524 = vmul.f32 -0.5, %v290
    %v525 = vadd.f32 %v524, 1.0
    %v526 = vmul.f32 %v525, %v290
    %v527 = vand.u32 2147483647, %v290
    %vm528 = vcmp.lt.f32.partialorder %v527, 0.0004427343
    %v529 = vsel %vm528, %v526, %v523
    %v530 = vadd.f32 %v292, 1.0
    %v531 = vlog2.pop %v530
    %v532 = vmul.f32 %v531, 0.6931472
    %v533 = vmul.f32 -0.5, %v292
    %v534 = vadd.f32 %v533, 1.0
    %v535 = vmul.f32 %v534, %v292
    %v536 = vand.u32 2147483647, %v292
    %vm537 = vcmp.lt.f32.partialorder %v536, 0.0004427343
    %v538 = vsel %vm537, %v535, %v532
    %v539 = vadd.f32 %v294, 1.0
    %v540 = vlog2.pop %v539
    %v541 = vmul.f32 %v540, 0.6931472
    %v542 = vmul.f32 -0.5, %v294
    %v543 = vadd.f32 %v542, 1.0
    %v544 = vmul.f32 %v543, %v294
    %v545 = vand.u32 2147483647, %v294
    %vm546 = vcmp.lt.f32.partialorder %v545, 0.0004427343
    %v547 = vsel %vm546, %v544, %v541
    %v548 = vadd.f32 %v296, 1.0
    %v549 = vlog2.pop %v548
    %v550 = vmul.f32 %v549, 0.6931472
    %v551 = vmul.f32 -0.5, %v296
    %v552 = vadd.f32 %v551, 1.0
    %v553 = vmul.f32 %v552, %v296
    %v554 = vand.u32 2147483647, %v296
    %vm555 = vcmp.lt.f32.partialorder %v554, 0.0004427343
    %v556 = vsel %vm555, %v553, %v550
    %v557 = vadd.f32 %v298, 1.0
    %v558 = vlog2.pop %v557
    %v559 = vmul.f32 %v558, 0.6931472
    %v560 = vmul.f32 -0.5, %v298
    %v561 = vadd.f32 %v560, 1.0
    %v562 = vmul.f32 %v561, %v298
    %v563 = vand.u32 2147483647, %v298
    %vm564 = vcmp.lt.f32.partialorder %v563, 0.0004427343
    %v565 = vsel %vm564, %v562, %v559
    %v566 = vadd.f32 %v300, 1.0
    %v567 = vlog2.pop %v566
    %v568 = vmul.f32 %v567, 0.6931472
    %v569 = vmul.f32 -0.5, %v300
    %v570 = vadd.f32 %v569, 1.0
    %v571 = vmul.f32 %v570, %v300
    %v572 = vand.u32 2147483647, %v300
    %vm573 = vcmp.lt.f32.partialorder %v572, 0.0004427343
    %v574 = vsel %vm573, %v571, %v568
    %v575 = vadd.f32 %v302, 1.0
    %v576 = vlog2.pop %v575
    %v577 = vmul.f32 %v576, 0.6931472
    %v578 = vmul.f32 -0.5, %v302
    %v579 = vadd.f32 %v578, 1.0
    %v580 = vmul.f32 %v579, %v302
    %v581 = vand.u32 2147483647, %v302
    %vm582 = vcmp.lt.f32.partialorder %v581, 0.0004427343
    %v583 = vsel %vm582, %v580, %v577
    %v584 = vadd.f32 %v304, 1.0
    %v585 = vlog2.pop %v584
    %v586 = vmul.f32 %v585, 0.6931472
    %v587 = vmul.f32 -0.5, %v304
    %v588 = vadd.f32 %v587, 1.0
    %v589 = vmul.f32 %v588, %v304
    %v590 = vand.u32 2147483647, %v304
    %vm591 = vcmp.lt.f32.partialorder %v590, 0.0004427343
    %v592 = vsel %vm591, %v589, %v586
    %v593 = vadd.f32 %v81, %v313
    %v594 = vadd.f32 %v82, %v322
    %v595 = vadd.f32 %v83, %v331
    %v596 = vadd.f32 %v84, %v340
    %v597 = vadd.f32 %v85, %v349
    %v598 = vadd.f32 %v86, %v358
    %v599 = vadd.f32 %v87, %v367
    %v600 = vadd.f32 %v88, %v376
    %v601 = vadd.f32 %v89, %v385
    %v602 = vadd.f32 %v90, %v394
    %v603 = vadd.f32 %v91, %v403
    %v604 = vadd.f32 %v92, %v412
    %v605 = vadd.f32 %v93, %v421
    %v606 = vadd.f32 %v94, %v430
    %v607 = vadd.f32 %v95, %v439
    %v608 = vadd.f32 %v96, %v448
    %v609 = vadd.f32 %v97, %v457
    %v610 = vadd.f32 %v98, %v466
    %v611 = vadd.f32 %v99, %v475
    %v612 = vadd.f32 %v100, %v484
    %v613 = vadd.f32 %v101, %v493
    %v614 = vadd.f32 %v102, %v502
    %v615 = vadd.f32 %v103, %v511
    %v616 = vadd.f32 %v104, %v520
    %v617 = vadd.f32 %v105, %v529
    %v618 = vadd.f32 %v106, %v538
    %v619 = vadd.f32 %v107, %v547
    %v620 = vadd.f32 %v108, %v556
    %v621 = vadd.f32 %v109, %v565
    %v622 = vadd.f32 %v110, %v574
    %v623 = vadd.f32 %v111, %v583
    %v624 = vadd.f32 %v112, %v592
    %v625 = vsel %vm113, %v145, %v593
    %v626 = vsel %vm114, %v146, %v594
    %v627 = vsel %vm115, %v147, %v595
    %v628 = vsel %vm116, %v148, %v596
    %v629 = vsel %vm117, %v149, %v597
    %v630 = vsel %vm118, %v150, %v598
    %v631 = vsel %vm119, %v151, %v599
    %v632 = vsel %vm120, %v152, %v600
    %v633 = vsel %vm121, %v153, %v601
    %v634 = vsel %vm122, %v154, %v602
    %v635 = vsel %vm123, %v155, %v603
    %v636 = vsel %vm124, %v156, %v604
    %v637 = vsel %vm125, %v157, %v605
    %v638 = vsel %vm126, %v158, %v606
    %v639 = vsel %vm127, %v159, %v607
    %v640 = vsel %vm128, %v160, %v608
    %v641 = vsel %vm129, %v161, %v609
    %v642 = vsel %vm130, %v162, %v610
    %v643 = vsel %vm131, %v163, %v611
    %v644 = vsel %vm132, %v164, %v612
    %v645 = vsel %vm133, %v165, %v613
    %v646 = vsel %vm134, %v166, %v614
    %v647 = vsel %vm135, %v167, %v615
    %v648 = vsel %vm136, %v168, %v616
    %v649 = vsel %vm137, %v169, %v617
    %v650 = vsel %vm138, %v170, %v618
    %v651 = vsel %vm139, %v171, %v619
    %v652 = vsel %vm140, %v172, %v620
    %v653 = vsel %vm141, %v173, %v621
    %v654 = vsel %vm142, %v174, %v622
    %v655 = vsel %vm143, %v175, %v623
    %v656 = vsel %vm144, %v176, %v624
    %v657 = vpack.c.bf16 %v626, %v625
    %v658 = vpack.c.bf16 %v628, %v627
    %v659 = vpack.c.bf16 %v630, %v629
    %v660 = vpack.c.bf16 %v632, %v631
    %v661 = vpack.c.bf16 %v634, %v633
    %v662 = vpack.c.bf16 %v636, %v635
    %v663 = vpack.c.bf16 %v638, %v637
    %v664 = vpack.c.bf16 %v640, %v639
    %v665 = vpack.c.bf16 %v642, %v641
    %v666 = vpack.c.bf16 %v644, %v643
    %v667 = vpack.c.bf16 %v646, %v645
    %v668 = vpack.c.bf16 %v648, %v647
    %v669 = vpack.c.bf16 %v650, %v649
    %v670 = vpack.c.bf16 %v652, %v651
    %v671 = vpack.c.bf16 %v654, %v653
    %v672 = vpack.c.bf16 %v656, %v655
    %v673 = vld [vmem:[#allocation3] sm:$0xff]
    %v674 = vld [vmem:[#allocation3 + $0x8] sm:$0xff]
    %v675 = vpack.c.bf16 %v674, %v673
    %v676 = vld [vmem:[#allocation2] sm:$0xff]
    %v677 = vld [vmem:[#allocation2 + $0x8] sm:$0xff]
    %v678 = vld [vmem:[#allocation2 + $0x10] sm:$0xff]
    %v679 = vld [vmem:[#allocation2 + $0x18] sm:$0xff]
    %680 = vmatprep.subr.bf16.mxu0 0
    %681 = vmatpush1.bf16.xpose.msra.mxu0 %v657
    %682 = vmatprep.subr.bf16.mxu0 0
    %683 = vmatpush1.bf16.xpose.msra.mxu0 %v658
    %684 = vmatprep.subr.bf16.mxu0 0
    %685 = vmatpush1.bf16.xpose.msra.mxu0 %v659
    %686 = vmatprep.subr.bf16.mxu0 0
    %687 = vmatpush1.bf16.xpose.msra.mxu0 %v660
    %688 = vmatprep.subr.bf16.mxu0 0
    %689 = vmatpush1.bf16.xpose.msra.mxu0 %v661
    %690 = vmatprep.subr.bf16.mxu0 0
    %691 = vmatpush1.bf16.xpose.msra.mxu0 %v662
    %692 = vmatprep.subr.bf16.mxu0 0
    %693 = vmatpush1.bf16.xpose.msra.mxu0 %v663
    %694 = vmatprep.subr.bf16.mxu0 0
    %695 = vmatpush1.bf16.xpose.msra.mxu0 %v664
    %696 = vmatprep.subr.bf16.mxu0 0
    %697 = vmatpush1.bf16.xpose.msra.mxu0 %v665
    %698 = vmatprep.subr.bf16.mxu0 0
    %699 = vmatpush1.bf16.xpose.msra.mxu0 %v666
    %700 = vmatprep.subr.bf16.mxu0 0
    %701 = vmatpush1.bf16.xpose.msra.mxu0 %v667
    %702 = vmatprep.subr.bf16.mxu0 0
    %703 = vmatpush1.bf16.xpose.msra.mxu0 %v668
    %704 = vmatprep.subr.bf16.mxu0 0
    %705 = vmatpush1.bf16.xpose.msra.mxu0 %v669
    %706 = vmatprep.subr.bf16.mxu0 0
    %707 = vmatpush1.bf16.xpose.msra.mxu0 %v670
    %708 = vmatprep.subr.bf16.mxu0 0
    %709 = vmatpush1.bf16.xpose.msra.mxu0 %v671
    %710 = vmatprep.subr.bf16.mxu0 0
    %711 = vmatpush1.bf16.xpose.msra.mxu0 %v672
    %712 = vmatprep.mubr.bf16.mxu0 0
    %713 = vmatmul.mubr.bf16.gmra.mrb[0].mxu0 %v675
    %v714 = vpop.f32.mrb[0].mxu0
    %v715 = vadd.f32 0.0, %v714
    %v716 = vpop.f32.mrb[0].mxu0
    %v717 = vadd.f32 0.0, %v716
    %v718 = vpop.f32.mrb[0].mxu0
    %v719 = vadd.f32 0.0, %v718
    %v720 = vpop.f32.mrb[0].mxu0
    %v721 = vadd.f32 0.0, %v720
    %722 = vdwg.mxu0
    %v723 = vadd.f32 %v676, %v715
    %v724 = vadd.f32 %v677, %v717
    %v725 = vadd.f32 %v678, %v719
    %v726 = vadd.f32 %v679, %v721
    %727 = vst [vmem:[#allocation2] sm:$0xff] %v723
    %728 = vst [vmem:[#allocation2 + $0x8] sm:$0xff] %v724
    %729 = vst [vmem:[#allocation2 + $0x10] sm:$0xff] %v725
    %730 = vst [vmem:[#allocation2 + $0x18] sm:$0xff] %v726
    // Predicated region
    $region22: #{tpu_custom_call.1} parent=1 // pred_check
      %p731 = pneg %p41
    $region23: #{tpu_custom_call.1} parent=1 // pred_check_branch
      %733 = sbr.rel (%p731) target = $region25
    $region24: #{tpu_custom_call.1} parent=1 // pred_region
      %v734 = vld [vmem:[#allocation2] sm:$0xff]
      %v735 = vld [vmem:[#allocation2 + $0x8] sm:$0xff]
      %v736 = vld [vmem:[#allocation2 + $0x10] sm:$0xff]
      %v737 = vld [vmem:[#allocation2 + $0x18] sm:$0xff]
      %738 = vst [vmem:[#allocation8] sm:$0xff] %v734
      %739 = vst [vmem:[#allocation8 + $0x8] sm:$0xff] %v735
      %740 = vst [vmem:[#allocation8 + $0x10] sm:$0xff] %v736
      %741 = vst [vmem:[#allocation8 + $0x18] sm:$0xff] %v737
    $region25: #{tpu_custom_call.1} parent=1 // pred_fallthru
      _
    // Predicated region
    $region26: #{tpu_custom_call.1} parent=1 // pred_check
      _
    $region27: #{tpu_custom_call.1} parent=1 // pred_check_branch
      %743 = sbr.rel (0) target = $region29
    $region28: #{tpu_custom_call.1} parent=1 // pred_region
      %s745 = ssub.s32 512, 512
      %746 = vsyncadd [#allocation5], %s745
      %s747 = sshll.u32 [#allocation8], 4
      %s748 = int_to_ptr.vmem [resolvable:$true] %s747
      %753 = dma.vmem_to_hbm [thread:$0]  %s748, 512, %s2, [#allocation5], 256, 256, 16
    $region29: #{tpu_custom_call.1} parent=1 // pred_fallthru
      _
    // Predicated region
    $region30: #{tpu_custom_call.1} parent=1 // pred_check
      _
    $region31: #{tpu_custom_call.1} parent=1 // pred_check_branch
      %755 = sbr.rel (0) target = $region33
    $region32: #{tpu_custom_call.1} parent=1 // pred_region
      %756 = dma.done [#allocation5], 512
    $region33: #{tpu_custom_call.1} parent=1 // pred_fallthru
      _
    %757 = vsyncpa [#allocation4], 1
    %758 = vsyncpa [#allocation7], 1
    %759 = vsyncpa [#allocation5], 1

</llo_original>
